<compile_context>
chip_gen: v5e
topology: v5e:2x2
jax: 0.10.0
libtpu: 0.0.40
codegen_flags: <defaults>
</compile_context>

<pallas_src>
import math

import jax
import jax.numpy as jnp
from jax.experimental import pallas as pl
from jax.experimental.pallas import tpu as pltpu

EPS = 1e-5


# ---------------------------- Pallas kernels ----------------------------

def _bn_relu_conv1x1_bn_relu_kernel(x_ref, s1_ref, b1_ref, w1_ref,
                                    s2_ref, b2_ref, o_ref):
    """x: (1, Cin, TN); params: (Cin,1)/(Cmid,Cin)/(Cmid,1); out: (1, Cmid, TN).

    Computes  relu(bn2(W1 @ relu(bn1(x))))  for one (batch, spatial-tile) block.
    """
    y = jnp.maximum(x_ref[0] * s1_ref[...] + b1_ref[...], 0.0)     # (Cin, TN)
    z = jnp.dot(w1_ref[...], y, preferred_element_type=jnp.float32)  # (Cmid, TN)
    o_ref[0] = jnp.maximum(z * s2_ref[...] + b2_ref[...], 0.0)


def _conv_matmul_kernel(c_ref, w_ref, o_ref):
    """c: (1, K, TN) transposed im2col; w: (Cout, K); out: (1, Cout, TN)."""
    o_ref[0] = jnp.dot(w_ref[...], c_ref[0], preferred_element_type=jnp.float32)


# ------------------------------ wrappers --------------------------------

def _pick_tile(total, cap=512):
    """Largest lane-friendly tile that divides `total` exactly (else full)."""
    for cand in (cap, 256, 128):
        if cand <= total and total % cand == 0:
            return cand
    return total   # full extent is always a legal block


def fused_stage1(x2, s1, b1, w1, s2, b2):
    """x2: (B, Cin, H*W) -> (B, Cmid, H*W) = relu(bn2(conv1x1(relu(bn1(x)))))."""
    B, Cin, HW = x2.shape
    Cmid = w1.shape[0]
    tn = _pick_tile(HW)
    grid = (B, HW // tn)
    return pl.pallas_call(
        _bn_relu_conv1x1_bn_relu_kernel,
        out_shape=jax.ShapeDtypeStruct((B, Cmid, HW), jnp.float32),
        grid=grid,
        in_specs=[pl.BlockSpec((1, Cin, tn), lambda b, t: (b, 0, t)),
                  pl.BlockSpec((Cin, 1), lambda b, t: (0, 0)),
                  pl.BlockSpec((Cin, 1), lambda b, t: (0, 0)),
                  pl.BlockSpec((Cmid, Cin), lambda b, t: (0, 0)),
                  pl.BlockSpec((Cmid, 1), lambda b, t: (0, 0)),
                  pl.BlockSpec((Cmid, 1), lambda b, t: (0, 0))],
        out_specs=pl.BlockSpec((1, Cmid, tn), lambda b, t: (b, 0, t)),
        compiler_params=pltpu.CompilerParams(
            dimension_semantics=("parallel", "parallel")),
    )(x2, s1, b1, w1, s2, b2)


def conv3x3_as_matmul(cols, w2m):
    """cols: (B, 9*Cmid, P), w2m: (Cout, 9*Cmid) -> (B, Cout, P)."""
    B, K, P = cols.shape
    Cout = w2m.shape[0]
    tn = _pick_tile(P)
    grid = (B, P // tn)
    return pl.pallas_call(
        _conv_matmul_kernel,
        out_shape=jax.ShapeDtypeStruct((B, Cout, P), jnp.float32),
        grid=grid,
        in_specs=[pl.BlockSpec((1, K, tn), lambda b, t: (b, 0, t)),
                  pl.BlockSpec((Cout, K), lambda b, t: (0, 0))],
        out_specs=pl.BlockSpec((1, Cout, tn), lambda b, t: (b, 0, t)),
        compiler_params=pltpu.CompilerParams(
            dimension_semantics=("parallel", "parallel")),
    )(cols, w2m)


# ------------------------------ glue (JAX) ------------------------------

def nearest_upsample_nchw(x, scale):
    """F.interpolate(mode='nearest', recompute_scale_factor=True) semantics."""
    B, C, H, W = x.shape
    Ho = int(math.floor(H * scale))
    Wo = int(math.floor(W * scale))
    ih = (jnp.arange(Ho) * H) // Ho
    iw = (jnp.arange(Wo) * W) // Wo
    return x[:, :, ih, :][:, :, :, iw]


def im2col_t_3x3(zp):
    """zp: (B, C, Hp, Wp) spatially padded by 1 -> (B, C*9, Ho*Wo).

    Reduction index order is (c, di, dj), matching OIHW weight .reshape(O, C*9).
    """
    B, C, Hp, Wp = zp.shape
    Ho, Wo = Hp - 2, Wp - 2
    slabs = [zp[:, :, di:di + Ho, dj:dj + Wo]
             for di in range(3) for dj in range(3)]
    pat = jnp.stack(slabs, axis=2)                   # (B, C, 9, Ho, Wo)
    return pat.reshape(B, C * 9, Ho * Wo), (Ho, Wo)


# ------------------------------- forward --------------------------------

def decoding_block_forward(x_nchw, P, scale_factor=2.0):
    B, Cin, H, W = x_nchw.shape
    x2 = x_nchw.reshape(B, Cin, H * W).astype(jnp.float32)

    # bn1 -> relu1 -> conv1(1x1) -> bn2 -> relu2   (one fused Pallas kernel)
    z = fused_stage1(x2, P['bn1_s'], P['bn1_b'], P['conv1_w2d'],
                     P['bn2_s'], P['bn2_b'])
    Cmid = z.shape[1]
    z = z.reshape(B, Cmid, H, W)

    # nearest upsample + pad + transposed im2col (cheap layout ops in XLA)
    zu = nearest_upsample_nchw(z, scale_factor)
    zp = jnp.pad(zu, ((0, 0), (0, 0), (1, 1), (1, 1)))
    cols, (Ho, Wo) = im2col_t_3x3(zp)

    # conv2 (3x3, pad=1, no bias) as one lane-dense Pallas matmul
    out = conv3x3_as_matmul(cols, P['conv2_wm'])     # (B, Cout, Ho*Wo)
    return out.reshape(B, -1, Ho, Wo)                # already NCHW order


# --------------------------- parameters (init) ---------------------------

def init_params(key, cin, cmid, cout):
    ks = jax.random.split(key, 12)
    it = iter(ks)

    def bn(c):
        gamma = 1.0 + 0.1 * jax.random.normal(next(it), (c,), jnp.float32)
        beta = 0.1 * jax.random.normal(next(it), (c,), jnp.float32)
        mean = 0.1 * jax.random.normal(next(it), (c,), jnp.float32)
        var = 1.0 + jax.random.uniform(next(it), (c,), jnp.float32)
        scale = gamma / jnp.sqrt(var + EPS)
        shift = beta - mean * scale
        return scale, shift

    s1, b1 = bn(cin)
    w1 = (jax.random.normal(next(it), (cmid, cin, 1, 1), jnp.float32)
          * math.sqrt(2.0 / cin))
    s2, b2 = bn(cmid)
    w2 = (jax.random.normal(next(it), (cout, cmid, 3, 3), jnp.float32)
          * math.sqrt(2.0 / (cmid * 9)))

    return dict(
        # kernel-side (channels-first column vectors / 2-D weight matrices)
        bn1_s=s1.reshape(cin, 1), bn1_b=b1.reshape(cin, 1),
        conv1_w2d=w1.reshape(cmid, cin),
        bn2_s=s2.reshape(cmid, 1), bn2_b=b2.reshape(cmid, 1),
        conv2_wm=w2.reshape(cout, cmid * 9),
        # reference-side (NCHW / OIHW)
        bn1_s4=s1.reshape(1, cin, 1, 1), bn1_b4=b1.reshape(1, cin, 1, 1),
        bn2_s4=s2.reshape(1, cmid, 1, 1), bn2_b4=b2.reshape(1, cmid, 1, 1),
        conv1_w=w1, conv2_w=w2,
    )


# ------------------------- pure-JAX reference ---------------------------

def ref_forward(x, P, scale_factor=2.0):
    hp = jax.lax.Precision.HIGHEST

    def conv(x, w, pad):
        return jax.lax.conv_general_dilated(
            x, w, (1, 1), ((pad, pad), (pad, pad)),
            dimension_numbers=('NCHW', 'OIHW', 'NCHW'), precision=hp)

    out = jnp.maximum(x * P['bn1_s4'] + P['bn1_b4'], 0.0)
    out = conv(out, P['conv1_w'], 0)
    out = jnp.maximum(out * P['bn2_s4'] + P['bn2_b4'], 0.0)
    out = nearest_upsample_nchw(out, scale_factor)
    out = conv(out, P['conv2_w'], 1)
    return out


# --------------------------------- main ----------------------------------

if __name__ == "__main__":
    key = jax.random.PRNGKey(0)
    kx, kp = jax.random.split(key)

    B, Cin, Cmid, Cout, H, W = 2, 16, 8, 8, 16, 16
    x = jax.random.normal(kx, (B, Cin, H, W), jnp.float32)
    P = init_params(kp, Cin, Cmid, Cout)

    fwd = jax.jit(decoding_block_forward)
    out = jax.block_until_ready(fwd(x, P))
    assert out.shape == (B, Cout, 2 * H, 2 * W), out.shape

    ref = jax.block_until_ready(ref_forward(x, P))
    max_err = float(jnp.max(jnp.abs(out - ref)))
    assert jnp.allclose(out, ref, atol=5e-2, rtol=5e-2), \
        f"max abs err {max_err}"

    print("KERNEL_OK")
</pallas_src>

<mosaic_0001>
module attributes {stable_mosaic.version = 11 : i64} {
  func.func @_bn_relu_conv1x1_bn_relu_kernel(%arg0: i32, %arg1: i32, %arg2: memref<1x16x256xf32, #tpu.memory_space<vmem>>, %arg3: memref<16x1xf32, #tpu.memory_space<vmem>>, %arg4: memref<16x1xf32, #tpu.memory_space<vmem>>, %arg5: memref<8x16xf32, #tpu.memory_space<vmem>>, %arg6: memref<8x1xf32, #tpu.memory_space<vmem>>, %arg7: memref<8x1xf32, #tpu.memory_space<vmem>>, %arg8: memref<1x8x256xf32, #tpu.memory_space<vmem>>) attributes {dimension_semantics = [#tpu.dimension_semantics<parallel>, #tpu.dimension_semantics<parallel>], iteration_bounds = array<i64: 2, 1>, scalar_prefetch = 0 : i64, scratch_operands = 0 : i64, tpu.core_type = #tpu.core_type<tc>, window_params = [{transform_indices = @transform_0, window_bounds = array<i64: 1, 16, 256>}, {pipeline_mode = #tpu.pipeline_mode<synchronous>, transform_indices = @transform_1, window_bounds = array<i64: 16, 1>}, {pipeline_mode = #tpu.pipeline_mode<synchronous>, transform_indices = @transform_2, window_bounds = array<i64: 16, 1>}, {pipeline_mode = #tpu.pipeline_mode<synchronous>, transform_indices = @transform_3, window_bounds = array<i64: 8, 16>}, {pipeline_mode = #tpu.pipeline_mode<synchronous>, transform_indices = @transform_4, window_bounds = array<i64: 8, 1>}, {pipeline_mode = #tpu.pipeline_mode<synchronous>, transform_indices = @transform_5, window_bounds = array<i64: 8, 1>}, {transform_indices = @transform_6, window_bounds = array<i64: 1, 8, 256>}]} {
    %c0 = arith.constant 0 : index
    %c0_0 = arith.constant 0 : index
    %c0_1 = arith.constant 0 : index
    %0 = vector.load %arg2[%c0, %c0_0, %c0_1] : memref<1x16x256xf32, #tpu.memory_space<vmem>>, vector<1x16x256xf32>
    %1 = vector.shape_cast %0 : vector<1x16x256xf32> to vector<16x256xf32>
    %c0_2 = arith.constant 0 : index
    %c0_3 = arith.constant 0 : index
    %2 = vector.load %arg3[%c0_2, %c0_3] : memref<16x1xf32, #tpu.memory_space<vmem>>, vector<16x1xf32>
    %3 = vector.broadcast %2 : vector<16x1xf32> to vector<16x256xf32>
    %4 = arith.mulf %1, %3 : vector<16x256xf32>
    %c0_4 = arith.constant 0 : index
    %c0_5 = arith.constant 0 : index
    %5 = vector.load %arg4[%c0_4, %c0_5] : memref<16x1xf32, #tpu.memory_space<vmem>>, vector<16x1xf32>
    %6 = vector.broadcast %5 : vector<16x1xf32> to vector<16x256xf32>
    %7 = arith.addf %4, %6 : vector<16x256xf32>
    %cst = arith.constant 0.000000e+00 : f32
    %8 = vector.broadcast %cst : f32 to vector<16x256xf32>
    %9 = arith.maximumf %7, %8 : vector<16x256xf32>
    %c0_6 = arith.constant 0 : index
    %c0_7 = arith.constant 0 : index
    %10 = vector.load %arg5[%c0_6, %c0_7] : memref<8x16xf32, #tpu.memory_space<vmem>>, vector<8x16xf32>
    %cst_8 = arith.constant dense<0.000000e+00> : vector<8x256xf32>
    %11 = tpu.matmul %10, %9, %cst_8 {dimension_numbers = #tpu.dot_dimension_numbers<[1], [0], [0], [1], [0, 0, 1, 1], [], []>} : vector<8x16xf32>, vector<16x256xf32>, vector<8x256xf32> -> vector<8x256xf32>
    %c0_9 = arith.constant 0 : index
    %c0_10 = arith.constant 0 : index
    %12 = vector.load %arg6[%c0_9, %c0_10] : memref<8x1xf32, #tpu.memory_space<vmem>>, vector<8x1xf32>
    %13 = vector.broadcast %12 : vector<8x1xf32> to vector<8x256xf32>
    %14 = arith.mulf %11, %13 : vector<8x256xf32>
    %c0_11 = arith.constant 0 : index
    %c0_12 = arith.constant 0 : index
    %15 = vector.load %arg7[%c0_11, %c0_12] : memref<8x1xf32, #tpu.memory_space<vmem>>, vector<8x1xf32>
    %16 = vector.broadcast %15 : vector<8x1xf32> to vector<8x256xf32>
    %17 = arith.addf %14, %16 : vector<8x256xf32>
    %cst_13 = arith.constant 0.000000e+00 : f32
    %18 = vector.broadcast %cst_13 : f32 to vector<8x256xf32>
    %19 = arith.maximumf %17, %18 : vector<8x256xf32>
    %c0_14 = arith.constant 0 : index
    %c0_15 = arith.constant 0 : index
    %c0_16 = arith.constant 0 : index
    %20 = vector.load %arg8[%c0_14, %c0_15, %c0_16] : memref<1x8x256xf32, #tpu.memory_space<vmem>>, vector<1x8x256xf32>
    %21 = vector.shape_cast %20 : vector<1x8x256xf32> to vector<8x256xf32>
    %22 = vector.shape_cast %19 : vector<8x256xf32> to vector<1x8x256xf32>
    tpu.vector_store %arg8[%c0_14, %c0_15, %c0_16], %22 {strides = array<i32>} : memref<1x8x256xf32, #tpu.memory_space<vmem>>, vector<1x8x256xf32>,
    return
  }
  func.func @transform_0(%arg0: i32, %arg1: i32) -> (i32, i32, i32) {
    %c0_i32 = arith.constant 0 : i32
    %c0_i32_0 = arith.constant 0 : i32
    return %arg0, %c0_i32, %arg1 : i32, i32, i32
  }
  func.func @transform_1(%arg0: i32, %arg1: i32) -> (i32, i32) {
    %c0_i32 = arith.constant 0 : i32
    %c0_i32_0 = arith.constant 0 : i32
    %c0_i32_1 = arith.constant 0 : i32
    return %c0_i32, %c0_i32_0 : i32, i32
  }
  func.func @transform_2(%arg0: i32, %arg1: i32) -> (i32, i32) {
    %c0_i32 = arith.constant 0 : i32
    %c0_i32_0 = arith.constant 0 : i32
    %c0_i32_1 = arith.constant 0 : i32
    return %c0_i32, %c0_i32_0 : i32, i32
  }
  func.func @transform_3(%arg0: i32, %arg1: i32) -> (i32, i32) {
    %c0_i32 = arith.constant 0 : i32
    %c0_i32_0 = arith.constant 0 : i32
    %c0_i32_1 = arith.constant 0 : i32
    return %c0_i32, %c0_i32_0 : i32, i32
  }
  func.func @transform_4(%arg0: i32, %arg1: i32) -> (i32, i32) {
    %c0_i32 = arith.constant 0 : i32
    %c0_i32_0 = arith.constant 0 : i32
    %c0_i32_1 = arith.constant 0 : i32
    return %c0_i32, %c0_i32_0 : i32, i32
  }
  func.func @transform_5(%arg0: i32, %arg1: i32) -> (i32, i32) {
    %c0_i32 = arith.constant 0 : i32
    %c0_i32_0 = arith.constant 0 : i32
    %c0_i32_1 = arith.constant 0 : i32
    return %c0_i32, %c0_i32_0 : i32, i32
  }
  func.func @transform_6(%arg0: i32, %arg1: i32) -> (i32, i32, i32) {
    %c0_i32 = arith.constant 0 : i32
    %c0_i32_0 = arith.constant 0 : i32
    return %arg0, %c0_i32, %arg1 : i32, i32, i32
  }
}

module attributes {stable_mosaic.version = 11 : i64} {
  func.func @_conv_matmul_kernel(%arg0: i32, %arg1: i32, %arg2: memref<1x72x512xf32, #tpu.memory_space<vmem>>, %arg3: memref<8x72xf32, #tpu.memory_space<vmem>>, %arg4: memref<1x8x512xf32, #tpu.memory_space<vmem>>) attributes {dimension_semantics = [#tpu.dimension_semantics<parallel>, #tpu.dimension_semantics<parallel>], iteration_bounds = array<i64: 2, 2>, scalar_prefetch = 0 : i64, scratch_operands = 0 : i64, tpu.core_type = #tpu.core_type<tc>, window_params = [{transform_indices = @transform_0, window_bounds = array<i64: 1, 72, 512>}, {pipeline_mode = #tpu.pipeline_mode<synchronous>, transform_indices = @transform_1, window_bounds = array<i64: 8, 72>}, {transform_indices = @transform_2, window_bounds = array<i64: 1, 8, 512>}]} {
    %c0 = arith.constant 0 : index
    %c0_0 = arith.constant 0 : index
    %0 = vector.load %arg3[%c0, %c0_0] : memref<8x72xf32, #tpu.memory_space<vmem>>, vector<8x72xf32>
    %c0_1 = arith.constant 0 : index
    %c0_2 = arith.constant 0 : index
    %c0_3 = arith.constant 0 : index
    %1 = vector.load %arg2[%c0_1, %c0_2, %c0_3] : memref<1x72x512xf32, #tpu.memory_space<vmem>>, vector<1x72x512xf32>
    %2 = vector.shape_cast %1 : vector<1x72x512xf32> to vector<72x512xf32>
    %cst = arith.constant dense<0.000000e+00> : vector<8x512xf32>
    %3 = tpu.matmul %0, %2, %cst {dimension_numbers = #tpu.dot_dimension_numbers<[1], [0], [0], [1], [0, 0, 1, 1], [], []>} : vector<8x72xf32>, vector<72x512xf32>, vector<8x512xf32> -> vector<8x512xf32>
    %c0_4 = arith.constant 0 : index
    %c0_5 = arith.constant 0 : index
    %c0_6 = arith.constant 0 : index
    %4 = vector.load %arg4[%c0_4, %c0_5, %c0_6] : memref<1x8x512xf32, #tpu.memory_space<vmem>>, vector<1x8x512xf32>
    %5 = vector.shape_cast %4 : vector<1x8x512xf32> to vector<8x512xf32>
    %6 = vector.shape_cast %3 : vector<8x512xf32> to vector<1x8x512xf32>
    tpu.vector_store %arg4[%c0_4, %c0_5, %c0_6], %6 {strides = array<i32>} : memref<1x8x512xf32, #tpu.memory_space<vmem>>, vector<1x8x512xf32>,
    return
  }
  func.func @transform_0(%arg0: i32, %arg1: i32) -> (i32, i32, i32) {
    %c0_i32 = arith.constant 0 : i32
    %c0_i32_0 = arith.constant 0 : i32
    return %arg0, %c0_i32, %arg1 : i32, i32, i32
  }
  func.func @transform_1(%arg0: i32, %arg1: i32) -> (i32, i32) {
    %c0_i32 = arith.constant 0 : i32
    %c0_i32_0 = arith.constant 0 : i32
    %c0_i32_1 = arith.constant 0 : i32
    return %c0_i32, %c0_i32_0 : i32, i32
  }
  func.func @transform_2(%arg0: i32, %arg1: i32) -> (i32, i32, i32) {
    %c0_i32 = arith.constant 0 : i32
    %c0_i32_0 = arith.constant 0 : i32
    return %arg0, %c0_i32, %arg1 : i32, i32, i32
  }
}

</mosaic_0001>

<llo_original>
// kernel: decoding_block_forward.2
$region0: #{decoding_block_forward.2}
  #allocation0 [shape = 'u32[]', space=smem, size = 0x4, offset = 0x4, fixed_abs, tag = 'smem constant byte address 0x4 - core index']
  #allocation1 [shape = 'u32[72,128]{1,0:T(1,128)}', space=vmem, size = 0x9000, scoped, tag = 'internal scratch']
  %s0 = inlined_call_operand.vmem [shape: f32[2,16,256], index: 0, kind: input, shape index: {}]
  %s1 = inlined_call_operand.vmem [shape: f32[16,1], index: 1, kind: input, shape index: {}]
  %s2 = inlined_call_operand.vmem [shape: f32[16,1], index: 2, kind: input, shape index: {}]
  %s3 = inlined_call_operand.hbm [shape: f32[8,16], index: 3, kind: input, shape index: {}]
  %s4 = inlined_call_operand.vmem [shape: f32[8,1], index: 4, kind: input, shape index: {}]
  %s5 = inlined_call_operand.vmem [shape: f32[8,1], index: 5, kind: input, shape index: {}]
  %s6 = inlined_call_operand.vmem [shape: f32[2,8,256], index: 6, kind: output, shape index: {}]
  %s7 = sld [smem:[#allocation0]]
  $region61: #{decoding_block_forward.2} parent=0
    _
  %s9 = ssub.s32 1, %s7
  %s10 = scalar_select 0, %s9, %s7
  $region1: #{decoding_block_forward.2} parent=0
    #allocation2 [shape = 'u8[4096]{0}', space=vmem, size = 0x1000, scoped, tag = 'input window, operand 3, single buffered']
    #allocation3 [shape = 's32[2]{0}', space=sflag, size = 0x8, scoped, tag = 'scoped memory for decoding_block_forward.2']
    %11 = vsyncpa [#allocation3], 0
    loop: start=0, step=1, limit=4
    $region2: #{decoding_block_forward.2} parent=1 // loop_pre_header
      _
    $region3: #{decoding_block_forward.2} parent=1 // loop_header
      %s13 = sphi 0, %s17
      %p14 = scmp.ge.s32.totalorder %s13, 4
      %s20 = sphi 0, %s32
      %s21 = sphi 0, %s28
      %s22 = sphi 0, %s20
      %s23 = sphi 0, %s21
      %s24 = sphi 0, %s22
      %s25 = sphi 0, %s23
      %s37 = sphi 0, %s39
      %s40 = sphi 0, %s37
      %s41 = sphi 0, %s40
      %s57 = sphi 0, %s41
      %s61 = sphi 0, %s61
      %s63 = sphi 0, %s61
      %s64 = sphi 0, %s63
      %s78 = sphi 0, %s64
      %s82 = sphi 0, %s82
      %s84 = sphi 0, %s82
      %s85 = sphi 0, %s84
      %s99 = sphi 0, %s85
      %s103 = sphi 0, %s103
      %s105 = sphi 0, %s103
      %s106 = sphi 0, %s105
      %s120 = sphi 0, %s106
      %s124 = sphi 0, %s124
      %s126 = sphi 0, %s124
      %s127 = sphi 0, %s126
      %s141 = sphi 0, %s127
      %s145 = sphi 0, %s145
      %s147 = sphi 0, %s145
      %s148 = sphi 0, %s147
      %s162 = sphi 0, %s148
      %s170 = sphi 0, %s172
      %s173 = sphi 0, %s170
      %s174 = sphi 0, %s173
      %s190 = sphi 0, %s174
    $region4: #{decoding_block_forward.2} parent=1 // loop_header_branch
      %16 = sbr.rel (%p14) target = $region8
    $region5: #{decoding_block_forward.2} parent=1 // loop_body
      %s18 = ssub.s32 %s13, 1
      %s19 = ssub.s32 %s13, 2
      %s26 = sadd.s32 1, %s21
      %p27 = scmp.ge.s32.totalorder %s26, 1
      %s28 = scalar_select %p27, 0, %s26
      %s29 = sadd.s32 1, %s20
      %s30 = scalar_select %p27, %s29, %s20
      %p31 = scmp.ge.s32.totalorder %s30, 2
      %s32 = scalar_select %p31, 0, %s30
      %s33 = ssub.s32 %s20, %s32
      %s34 = ssub.s32 %s21, %s28
      %s35 = sor.u32 %s33, %s34
      %p36 = scmp.eq.s32.totalorder %s35, 0
      %s38 = sadd.s32 %s37, 1
      %s39 = scalar_select %p36, %s37, %s38
      %p42 = pneg %p36
      %p43 = scmp.eq.s32.totalorder %s13, 1
      %p44 = por %p42, %p43
      %p45 = scmp.ne.s32.totalorder %s37, %s40
      %p46 = scmp.eq.s32.totalorder %s13, 0
      %p47 = por %p45, %p46
      %p48 = scmp.ne.s32.totalorder %s37, %s40
      %p49 = scmp.eq.s32.totalorder %s18, 1
      %p50 = por %p48, %p49
      %p51 = scmp.ne.s32.totalorder %s40, %s41
      %p52 = scmp.eq.s32.totalorder %s18, 0
      %p53 = por %p51, %p52
      %p54 = scmp.ne.s32.totalorder %s40, %s41
      %p55 = scmp.eq.s32.totalorder %s19, 1
      %p56 = por %p54, %p55
      %p58 = scmp.ne.s32.totalorder %s41, %s57
      %p59 = scmp.eq.s32.totalorder %s19, 0
      %p60 = por %p58, %p59
      %s62 = sadd.s32 %s61, 1
      %p65 = scmp.eq.s32.totalorder %s13, 1
      %p66 = scmp.ne.s32.totalorder %s61, %s63
      %p67 = scmp.eq.s32.totalorder %s13, 0
      %p68 = por %p66, %p67
      %p69 = scmp.ne.s32.totalorder %s61, %s63
      %p70 = scmp.eq.s32.totalorder %s18, 1
      %p71 = por %p69, %p70
      %p72 = scmp.ne.s32.totalorder %s63, %s64
      %p73 = scmp.eq.s32.totalorder %s18, 0
      %p74 = por %p72, %p73
      %p75 = scmp.ne.s32.totalorder %s63, %s64
      %p76 = scmp.eq.s32.totalorder %s19, 1
      %p77 = por %p75, %p76
      %p79 = scmp.ne.s32.totalorder %s64, %s78
      %p80 = scmp.eq.s32.totalorder %s19, 0
      %p81 = por %p79, %p80
      %s83 = sadd.s32 %s82, 1
      %p86 = scmp.eq.s32.totalorder %s13, 1
      %p87 = scmp.ne.s32.totalorder %s82, %s84
      %p88 = scmp.eq.s32.totalorder %s13, 0
      %p89 = por %p87, %p88
      %p90 = scmp.ne.s32.totalorder %s82, %s84
      %p91 = scmp.eq.s32.totalorder %s18, 1
      %p92 = por %p90, %p91
      %p93 = scmp.ne.s32.totalorder %s84, %s85
      %p94 = scmp.eq.s32.totalorder %s18, 0
      %p95 = por %p93, %p94
      %p96 = scmp.ne.s32.totalorder %s84, %s85
      %p97 = scmp.eq.s32.totalorder %s19, 1
      %p98 = por %p96, %p97
      %p100 = scmp.ne.s32.totalorder %s85, %s99
      %p101 = scmp.eq.s32.totalorder %s19, 0
      %p102 = por %p100, %p101
      %s104 = sadd.s32 %s103, 1
      %p107 = scmp.eq.s32.totalorder %s13, 1
      %p108 = scmp.ne.s32.totalorder %s103, %s105
      %p109 = scmp.eq.s32.totalorder %s13, 0
      %p110 = por %p108, %p109
      %p111 = scmp.ne.s32.totalorder %s103, %s105
      %p112 = scmp.eq.s32.totalorder %s18, 1
      %p113 = por %p111, %p112
      %p114 = scmp.ne.s32.totalorder %s105, %s106
      %p115 = scmp.eq.s32.totalorder %s18, 0
      %p116 = por %p114, %p115
      %p117 = scmp.ne.s32.totalorder %s105, %s106
      %p118 = scmp.eq.s32.totalorder %s19, 1
      %p119 = por %p117, %p118
      %p121 = scmp.ne.s32.totalorder %s106, %s120
      %p122 = scmp.eq.s32.totalorder %s19, 0
      %p123 = por %p121, %p122
      %s125 = sadd.s32 %s124, 1
      %p128 = scmp.eq.s32.totalorder %s13, 1
      %p129 = scmp.ne.s32.totalorder %s124, %s126
      %p130 = scmp.eq.s32.totalorder %s13, 0
      %p131 = por %p129, %p130
      %p132 = scmp.ne.s32.totalorder %s124, %s126
      %p133 = scmp.eq.s32.totalorder %s18, 1
      %p134 = por %p132, %p133
      %p135 = scmp.ne.s32.totalorder %s126, %s127
      %p136 = scmp.eq.s32.totalorder %s18, 0
      %p137 = por %p135, %p136
      %p138 = scmp.ne.s32.totalorder %s126, %s127
      %p139 = scmp.eq.s32.totalorder %s19, 1
      %p140 = por %p138, %p139
      %p142 = scmp.ne.s32.totalorder %s127, %s141
      %p143 = scmp.eq.s32.totalorder %s19, 0
      %p144 = por %p142, %p143
      %s146 = sadd.s32 %s145, 1
      %p149 = scmp.eq.s32.totalorder %s13, 1
      %p150 = scmp.ne.s32.totalorder %s145, %s147
      %p151 = scmp.eq.s32.totalorder %s13, 0
      %p152 = por %p150, %p151
      %p153 = scmp.ne.s32.totalorder %s145, %s147
      %p154 = scmp.eq.s32.totalorder %s18, 1
      %p155 = por %p153, %p154
      %p156 = scmp.ne.s32.totalorder %s147, %s148
      %p157 = scmp.eq.s32.totalorder %s18, 0
      %p158 = por %p156, %p157
      %p159 = scmp.ne.s32.totalorder %s147, %s148
      %p160 = scmp.eq.s32.totalorder %s19, 1
      %p161 = por %p159, %p160
      %p163 = scmp.ne.s32.totalorder %s148, %s162
      %p164 = scmp.eq.s32.totalorder %s19, 0
      %p165 = por %p163, %p164
      %s166 = ssub.s32 %s20, %s32
      %s167 = ssub.s32 %s21, %s28
      %s168 = sor.u32 %s166, %s167
      %p169 = scmp.eq.s32.totalorder %s168, 0
      %s171 = sadd.s32 %s170, 1
      %s172 = scalar_select %p169, %s170, %s171
      %p175 = pneg %p169
      %p176 = scmp.eq.s32.totalorder %s13, 1
      %p177 = por %p175, %p176
      %p178 = scmp.ne.s32.totalorder %s170, %s173
      %p179 = scmp.eq.s32.totalorder %s13, 0
      %p180 = por %p178, %p179
      %p181 = scmp.ne.s32.totalorder %s170, %s173
      %p182 = scmp.eq.s32.totalorder %s18, 1
      %p183 = por %p181, %p182
      %p184 = scmp.ne.s32.totalorder %s173, %s174
      %p185 = scmp.eq.s32.totalorder %s18, 0
      %p186 = por %p184, %p185
      %p187 = scmp.ne.s32.totalorder %s173, %s174
      %p188 = scmp.eq.s32.totalorder %s19, 1
      %p189 = por %p187, %p188
      %p191 = scmp.ne.s32.totalorder %s174, %s190
      %p192 = scmp.eq.s32.totalorder %s19, 0
      %p193 = por %p191, %p192
      %p194 = scmp.le.s32.totalorder 1, %s13
      %p195 = scmp.lt.s32.totalorder %s13, 3
      %p196 = pnand %p194, %p195
      %p197 = pneg %p196
      // Predicated region
      $region9: #{decoding_block_forward.2} parent=5 // pred_check
        _
      $region10: #{decoding_block_forward.2} parent=5 // pred_check_branch
        %199 = sbr.rel (%p196) target = $region12
      $region11: #{decoding_block_forward.2} parent=5 // pred_region
        %s200 = ssub.s32 %s13, 1
        // Predicated region
        $region13: #{decoding_block_forward.2} parent=11 // pred_check
          %p201 = pneg %p74
        $region14: #{decoding_block_forward.2} parent=11 // pred_check_branch
          %203 = sbr.rel (%p201) target = $region16
        $region15: #{decoding_block_forward.2} parent=11 // pred_region
          _
        $region16: #{decoding_block_forward.2} parent=11 // pred_fallthru
          _
        // Predicated region
        $region17: #{decoding_block_forward.2} parent=11 // pred_check
          %p204 = pneg %p95
        $region18: #{decoding_block_forward.2} parent=11 // pred_check_branch
          %206 = sbr.rel (%p204) target = $region20
        $region19: #{decoding_block_forward.2} parent=11 // pred_region
          _
        $region20: #{decoding_block_forward.2} parent=11 // pred_fallthru
          _
        // Predicated region
        $region21: #{decoding_block_forward.2} parent=11 // pred_check
          %p207 = pneg %p116
        $region22: #{decoding_block_forward.2} parent=11 // pred_check_branch
          %209 = sbr.rel (%p207) target = $region24
        $region23: #{decoding_block_forward.2} parent=11 // pred_region
          %211 = vsyncadd [#allocation3], 0
          %s213 = sshll.u32 %s3, 4
          %s214 = int_to_ptr.hbm [resolvable:$true] %s213
          %s215 = sshll.u32 [#allocation2], 4
          %s216 = int_to_ptr.vmem [resolvable:$true] %s215
          %218 = dma.hbm_to_vmem [thread:$0]  %s214, 128, %s216, [#allocation3]
        $region24: #{decoding_block_forward.2} parent=11 // pred_fallthru
          _
        // Predicated region
        $region25: #{decoding_block_forward.2} parent=11 // pred_check
          %p219 = pneg %p137
        $region26: #{decoding_block_forward.2} parent=11 // pred_check_branch
          %221 = sbr.rel (%p219) target = $region28
        $region27: #{decoding_block_forward.2} parent=11 // pred_region
          _
        $region28: #{decoding_block_forward.2} parent=11 // pred_fallthru
          _
        // Predicated region
        $region29: #{decoding_block_forward.2} parent=11 // pred_check
          %p222 = pneg %p158
        $region30: #{decoding_block_forward.2} parent=11 // pred_check_branch
          %224 = sbr.rel (%p222) target = $region32
        $region31: #{decoding_block_forward.2} parent=11 // pred_region
          _
        $region32: #{decoding_block_forward.2} parent=11 // pred_fallthru
          _
      $region12: #{decoding_block_forward.2} parent=5 // pred_fallthru
        _
      %p225 = scmp.lt.s32.totalorder %s13, 2
      // Predicated region
      $region33: #{decoding_block_forward.2} parent=5 // pred_check
        %p226 = pneg %p225
      $region34: #{decoding_block_forward.2} parent=5 // pred_check_branch
        %228 = sbr.rel (%p226) target = $region36
      $region35: #{decoding_block_forward.2} parent=5 // pred_region
        // Predicated region
        $region37: #{decoding_block_forward.2} parent=35 // pred_check
          %p229 = pneg %p47
        $region38: #{decoding_block_forward.2} parent=35 // pred_check_branch
          %231 = sbr.rel (%p229) target = $region40
        $region39: #{decoding_block_forward.2} parent=35 // pred_region
          %s232 = smul.u32 2, %s21
          %p233 = scmp.lt.s32.totalorder %s20, 1
          %s234 = scalar_select %p233, %s20, 1
          %p235 = scmp.lt.s32.totalorder %s232, 1
          %s236 = scalar_select %p235, %s232, 1
          %s237 = smul.addr %s234, 4
          %s238 = sadd.s32 %s236, %s237
          %s239 = smul.addr %s238, 8
          %s240 = scalar_lea.vmem %s0, %s239
          %s241 = smul.u32 2, %s21
        $region40: #{decoding_block_forward.2} parent=35 // pred_fallthru
          _
      $region36: #{decoding_block_forward.2} parent=5 // pred_fallthru
        _
      %p242 = scmp.le.s32.totalorder 1, %s13
      %p243 = scmp.lt.s32.totalorder %s13, 3
      %p244 = pnand %p242, %p243
      %p245 = pneg %p244
      // Predicated region
      $region41: #{decoding_block_forward.2} parent=5 // pred_check
        _
      $region42: #{decoding_block_forward.2} parent=5 // pred_check_branch
        %247 = sbr.rel (%p244) target = $region44
      $region43: #{decoding_block_forward.2} parent=5 // pred_region
        %s248 = ssub.s32 %s13, 1
        // Predicated region
        $region45: #{decoding_block_forward.2} parent=43 // pred_check
          %p249 = pneg %p116
        $region46: #{decoding_block_forward.2} parent=43 // pred_check_branch
          %251 = sbr.rel (%p249) target = $region48
        $region47: #{decoding_block_forward.2} parent=43 // pred_region
          %253 = dma.done [#allocation3], 128
        $region48: #{decoding_block_forward.2} parent=43 // pred_fallthru
          _
        %s254 = smul.u32 2, %s23
        %p255 = scmp.lt.s32.totalorder %s22, 1
        %s256 = scalar_select %p255, %s22, 1
        %p257 = scmp.lt.s32.totalorder %s254, 1
        %s258 = scalar_select %p257, %s254, 1
        %s259 = smul.addr %s256, 4
        %s260 = sadd.s32 %s258, %s259
        %s261 = smul.addr %s260, 8
        %s262 = scalar_lea.vmem %s0, %s261
        %p263 = pneg %p53
        %p264 = pneg %p50
        %p265 = pneg %p74
        %p266 = pneg %p71
        %p267 = pneg %p95
        %p268 = pneg %p92
        %p269 = pneg %p116
        %p270 = pneg %p113
        %p271 = pneg %p137
        %p272 = pneg %p134
        %p273 = pneg %p158
        %p274 = pneg %p155
        %p275 = pneg %p186
        %p276 = pneg %p183
        %s277 = smul.u32 2, %s23
        %p278 = scmp.lt.s32.totalorder %s22, 1
        %s279 = scalar_select %p278, %s22, 1
        %p280 = scmp.lt.s32.totalorder %s277, 1
        %s281 = scalar_select %p280, %s277, 1
        %s282 = smul.addr %s279, 2
        %s283 = sadd.s32 %s281, %s282
        %s284 = smul.addr %s283, 8
        %s285 = scalar_lea.vmem %s6, %s284
        %s286 = smul.u32 2, %s23
        %p287 = scmp.lt.s32.totalorder %s22, 1
        %s288 = scalar_select %p287, %s22, 1
        %p289 = scmp.lt.s32.totalorder %s286, 1
        %s290 = scalar_select %p289, %s286, 1
        %s291 = smul.addr %s288, 4
        %s292 = sadd.s32 %s290, %s291
        %s293 = smul.addr %s292, 8
        %s294 = scalar_lea.vmem %s0, %s293
        %s295 = smul.u32 2, %s23
        %s296 = smul.u32 2, %s23
        %p297 = scmp.lt.s32.totalorder %s22, 1
        %s298 = scalar_select %p297, %s22, 1
        %p299 = scmp.lt.s32.totalorder %s296, 1
        %s300 = scalar_select %p299, %s296, 1
        %s301 = smul.addr %s298, 2
        %s302 = sadd.s32 %s300, %s301
        %s303 = smul.addr %s302, 8
        %s304 = scalar_lea.vmem %s6, %s303
        %s305 = smul.u32 2, %s23
        %v306 = vld [vmem:[%s294] sm:$0xff]
        %v307 = vld [vmem:[%s294 + $0x8] sm:$0xff]
        %v308 = vld [vmem:[%s294 + $0x10] sm:$0xff]
        %v309 = vld [vmem:[%s294 + $0x18] sm:$0xff]
        %v310 = vld [vmem:[%s1] sm:$0xff]
        %v311 = vld [vmem:[%s1 + $0x8] sm:$0xff]
        %313 = vset.pattern.permute.xlu0 0
        %314 = vperm.xlu0 %313, %v310
        %v315 = vpop.permute.xlu0 %314
        %318 = vset.pattern.permute.xlu0 0
        %319 = vperm.xlu0 %318, %v311
        %v320 = vpop.permute.xlu0 %319
        %v322 = vmul.f32 %v306, %v315
        %v323 = vmul.f32 %v307, %v315
        %v324 = vmul.f32 %v308, %v320
        %v325 = vmul.f32 %v309, %v320
        %v326 = vld [vmem:[%s2] sm:$0xff]
        %v327 = vld [vmem:[%s2 + $0x8] sm:$0xff]
        %329 = vset.pattern.permute.xlu0 0
        %330 = vperm.xlu0 %329, %v326
        %v331 = vpop.permute.xlu0 %330
        %334 = vset.pattern.permute.xlu0 0
        %335 = vperm.xlu0 %334, %v327
        %v336 = vpop.permute.xlu0 %335
        %v338 = vadd.f32 %v322, %v331
        %v339 = vadd.f32 %v323, %v331
        %v340 = vadd.f32 %v324, %v336
        %v341 = vadd.f32 %v325, %v336
        %v342 = vmax.f32 %v338, 0.0
        %v343 = vmax.f32 %v339, 0.0
        %v344 = vmax.f32 %v340, 0.0
        %v345 = vmax.f32 %v341, 0.0
        %v346 = vld [vmem:[#allocation2] sm:$0xff]
        %vm347 = vcmask 130048
        %v349 = vsel %vm347, %v346, 0
        %351 = vmatpush.msra.mxu0 0.0
        %352 = vmatpush.msra.mxu0 0.0
        %353 = vmatpush.msra.mxu0 0.0
        %354 = vmatpush.msra.mxu0 0.0
        %355 = vmatpush.msra.mxu0 0.0
        %356 = vmatpush.msra.mxu0 0.0
        %357 = vmatpush.msra.mxu0 0.0
        %358 = vmatpush.msra.mxu0 0.0
        %359 = vmatpush.msra.mxu0 0.0
        %360 = vmatpush.msra.mxu0 0.0
        %361 = vmatpush.msra.mxu0 0.0
        %362 = vmatpush.msra.mxu0 0.0
        %363 = vmatpush.msra.mxu0 0.0
        %364 = vmatpush.msra.mxu0 0.0
        %365 = vmatpush.msra.mxu0 %v344
        %366 = vmatpush.msra.mxu0 %v342
        %367 = vmatmul.f32.gmra.mxu0 %v349
        %v368 = vpop.f32.mrf.mxu0
        %v369 = vadd.f32 0.0, %v368
        %370 = vdwg.mxu0
        %371 = vmatpush.msra.mxu0 0.0
        %372 = vmatpush.msra.mxu0 0.0
        %373 = vmatpush.msra.mxu0 0.0
        %374 = vmatpush.msra.mxu0 0.0
        %375 = vmatpush.msra.mxu0 0.0
        %376 = vmatpush.msra.mxu0 0.0
        %377 = vmatpush.msra.mxu0 0.0
        %378 = vmatpush.msra.mxu0 0.0
        %379 = vmatpush.msra.mxu0 0.0
        %380 = vmatpush.msra.mxu0 0.0
        %381 = vmatpush.msra.mxu0 0.0
        %382 = vmatpush.msra.mxu0 0.0
        %383 = vmatpush.msra.mxu0 0.0
        %384 = vmatpush.msra.mxu0 0.0
        %385 = vmatpush.msra.mxu0 %v345
        %386 = vmatpush.msra.mxu0 %v343
        %387 = vmatmul.f32.gmra.mxu0 %v349
        %v388 = vpop.f32.mrf.mxu0
        %v389 = vadd.f32 0.0, %v388
        %390 = vdwg.mxu0
        %v391 = vld [vmem:[%s4] sm:$0xff]
        %393 = vset.pattern.permute.xlu0 0
        %394 = vperm.xlu0 %393, %v391
        %v395 = vpop.permute.xlu0 %394
        %v397 = vmul.f32 %v369, %v395
        %v398 = vmul.f32 %v389, %v395
        %v399 = vld [vmem:[%s5] sm:$0xff]
        %401 = vset.pattern.permute.xlu0 0
        %402 = vperm.xlu0 %401, %v399
        %v403 = vpop.permute.xlu0 %402
        %v405 = vadd.f32 %v397, %v403
        %v406 = vadd.f32 %v398, %v403
        %v407 = vmax.f32 %v405, 0.0
        %v408 = vmax.f32 %v406, 0.0
        %409 = vst [vmem:[%s304] sm:$0xff] %v407
        %410 = vst [vmem:[%s304 + $0x8] sm:$0xff] %v408
        %s411 = smul.u32 2, %s23
        %p412 = scmp.lt.s32.totalorder %s22, 1
        %s413 = scalar_select %p412, %s22, 1
        %p414 = scmp.lt.s32.totalorder %s411, 1
        %s415 = scalar_select %p414, %s411, 1
        %s416 = smul.addr %s413, 2
        %s417 = sadd.s32 %s415, %s416
        %s418 = smul.addr %s417, 8
        %s419 = scalar_lea.vmem %s6, %s418
        // Predicated region
        $region49: #{decoding_block_forward.2} parent=43 // pred_check
          %p420 = pneg %p183
        $region50: #{decoding_block_forward.2} parent=43 // pred_check_branch
          %422 = sbr.rel (%p420) target = $region52
        $region51: #{decoding_block_forward.2} parent=43 // pred_region
          %s423 = smul.u32 2, %s23
        $region52: #{decoding_block_forward.2} parent=43 // pred_fallthru
          _
      $region44: #{decoding_block_forward.2} parent=5 // pred_fallthru
        _
      %p424 = scmp.le.s32.totalorder 2, %s13
      // Predicated region
      $region53: #{decoding_block_forward.2} parent=5 // pred_check
        %p425 = pneg %p424
      $region54: #{decoding_block_forward.2} parent=5 // pred_check_branch
        %427 = sbr.rel (%p425) target = $region56
      $region55: #{decoding_block_forward.2} parent=5 // pred_region
        %s428 = ssub.s32 %s13, 2
        // Predicated region
        $region57: #{decoding_block_forward.2} parent=55 // pred_check
          %p429 = pneg %p189
        $region58: #{decoding_block_forward.2} parent=55 // pred_check_branch
          %431 = sbr.rel (%p429) target = $region60
        $region59: #{decoding_block_forward.2} parent=55 // pred_region
          %s432 = smul.u32 2, %s25
          %p433 = scmp.lt.s32.totalorder %s24, 1
          %s434 = scalar_select %p433, %s24, 1
          %p435 = scmp.lt.s32.totalorder %s432, 1
          %s436 = scalar_select %p435, %s432, 1
          %s437 = smul.addr %s434, 2
          %s438 = sadd.s32 %s436, %s437
          %s439 = smul.addr %s438, 8
          %s440 = scalar_lea.vmem %s6, %s439
        $region60: #{decoding_block_forward.2} parent=55 // pred_fallthru
          _
      $region56: #{decoding_block_forward.2} parent=5 // pred_fallthru
        _
    $region6: #{decoding_block_forward.2} parent=1 // loop_footer
      %s17 = sadd.s32 1, %s13
    $region7: #{decoding_block_forward.2} parent=1 // loop_footer_branch
      %12 = sbr.rel target = $region3
    $region8: #{decoding_block_forward.2} parent=1 // loop_exit
      _
    %441 = vsyncpa [#allocation3], 1
    %s442 = scalar_lea.sflag [#allocation3], 1
    %443 = vsyncpa %s442, 1

// kernel: decoding_block_forward.3
$region0: #{decoding_block_forward.3}
  #allocation0 [shape = 'u32[]', space=smem, size = 0x4, offset = 0x4, fixed_abs, tag = 'smem constant byte address 0x4 - core index']
  #allocation1 [shape = 'u32[72,128]{1,0:T(1,128)}', space=vmem, size = 0x9000, scoped, tag = 'internal scratch']
  %s0 = inlined_call_operand.vmem [shape: f32[2,72,1024], index: 0, kind: input, shape index: {}]
  %s1 = inlined_call_operand.vmem [shape: f32[8,72], index: 1, kind: input, shape index: {}]
  %s2 = inlined_call_operand.vmem [shape: f32[2,8,1024], index: 2, kind: output, shape index: {}]
  %s3 = sld [smem:[#allocation0]]
  $region64: #{decoding_block_forward.3} parent=0
    _
  %s5 = ssub.s32 1, %s3
  %s6 = scalar_select 0, %s5, %s3
  $region1: #{decoding_block_forward.3} parent=0
    #allocation2 [shape = 'u8[294912]{0}', space=vmem, size = 0x48000, scoped, tag = 'input window, operand 0']
    loop: start=0, step=1, limit=6
    $region2: #{decoding_block_forward.3} parent=1 // loop_pre_header
      _
    $region3: #{decoding_block_forward.3} parent=1 // loop_header
      %s8 = sphi 0, %s12
      %p9 = scmp.ge.s32.totalorder %s8, 6
      %s15 = sphi 0, %s27
      %s16 = sphi 0, %s23
      %s17 = sphi 0, %s15
      %s18 = sphi 0, %s16
      %s19 = sphi 0, %s17
      %s20 = sphi 0, %s18
      %s32 = sphi 0, %s34
      %s35 = sphi 0, %s32
      %s36 = sphi 0, %s35
      %s52 = sphi 0, %s36
      %s56 = sphi 0, %s56
      %s58 = sphi 0, %s56
      %s59 = sphi 0, %s58
      %s73 = sphi 0, %s59
      %s81 = sphi 0, %s83
      %s84 = sphi 0, %s81
      %s85 = sphi 0, %s84
      %s101 = sphi 0, %s85
    $region4: #{decoding_block_forward.3} parent=1 // loop_header_branch
      %11 = sbr.rel (%p9) target = $region8
    $region5: #{decoding_block_forward.3} parent=1 // loop_body
      %s13 = ssub.s32 %s8, 1
      %s14 = ssub.s32 %s8, 2
      %s21 = sadd.s32 1, %s16
      %p22 = scmp.ge.s32.totalorder %s21, 2
      %s23 = scalar_select %p22, 0, %s21
      %s24 = sadd.s32 1, %s15
      %s25 = scalar_select %p22, %s24, %s15
      %p26 = scmp.ge.s32.totalorder %s25, 2
      %s27 = scalar_select %p26, 0, %s25
      %s28 = ssub.s32 %s15, %s27
      %s29 = ssub.s32 %s16, %s23
      %s30 = sor.u32 %s28, %s29
      %p31 = scmp.eq.s32.totalorder %s30, 0
      %s33 = sadd.s32 %s32, 1
      %s34 = scalar_select %p31, %s32, %s33
      %p37 = pneg %p31
      %p38 = scmp.eq.s32.totalorder %s8, 3
      %p39 = por %p37, %p38
      %p40 = scmp.ne.s32.totalorder %s32, %s35
      %p41 = scmp.eq.s32.totalorder %s8, 0
      %p42 = por %p40, %p41
      %p43 = scmp.ne.s32.totalorder %s32, %s35
      %p44 = scmp.eq.s32.totalorder %s13, 3
      %p45 = por %p43, %p44
      %p46 = scmp.ne.s32.totalorder %s35, %s36
      %p47 = scmp.eq.s32.totalorder %s13, 0
      %p48 = por %p46, %p47
      %p49 = scmp.ne.s32.totalorder %s35, %s36
      %p50 = scmp.eq.s32.totalorder %s14, 3
      %p51 = por %p49, %p50
      %p53 = scmp.ne.s32.totalorder %s36, %s52
      %p54 = scmp.eq.s32.totalorder %s14, 0
      %p55 = por %p53, %p54
      %s57 = sadd.s32 %s56, 1
      %p60 = scmp.eq.s32.totalorder %s8, 3
      %p61 = scmp.ne.s32.totalorder %s56, %s58
      %p62 = scmp.eq.s32.totalorder %s8, 0
      %p63 = por %p61, %p62
      %p64 = scmp.ne.s32.totalorder %s56, %s58
      %p65 = scmp.eq.s32.totalorder %s13, 3
      %p66 = por %p64, %p65
      %p67 = scmp.ne.s32.totalorder %s58, %s59
      %p68 = scmp.eq.s32.totalorder %s13, 0
      %p69 = por %p67, %p68
      %p70 = scmp.ne.s32.totalorder %s58, %s59
      %p71 = scmp.eq.s32.totalorder %s14, 3
      %p72 = por %p70, %p71
      %p74 = scmp.ne.s32.totalorder %s59, %s73
      %p75 = scmp.eq.s32.totalorder %s14, 0
      %p76 = por %p74, %p75
      %s77 = ssub.s32 %s15, %s27
      %s78 = ssub.s32 %s16, %s23
      %s79 = sor.u32 %s77, %s78
      %p80 = scmp.eq.s32.totalorder %s79, 0
      %s82 = sadd.s32 %s81, 1
      %s83 = scalar_select %p80, %s81, %s82
      %p86 = pneg %p80
      %p87 = scmp.eq.s32.totalorder %s8, 3
      %p88 = por %p86, %p87
      %p89 = scmp.ne.s32.totalorder %s81, %s84
      %p90 = scmp.eq.s32.totalorder %s8, 0
      %p91 = por %p89, %p90
      %p92 = scmp.ne.s32.totalorder %s81, %s84
      %p93 = scmp.eq.s32.totalorder %s13, 3
      %p94 = por %p92, %p93
      %p95 = scmp.ne.s32.totalorder %s84, %s85
      %p96 = scmp.eq.s32.totalorder %s13, 0
      %p97 = por %p95, %p96
      %p98 = scmp.ne.s32.totalorder %s84, %s85
      %p99 = scmp.eq.s32.totalorder %s14, 3
      %p100 = por %p98, %p99
      %p102 = scmp.ne.s32.totalorder %s85, %s101
      %p103 = scmp.eq.s32.totalorder %s14, 0
      %p104 = por %p102, %p103
      %p105 = scmp.le.s32.totalorder 1, %s8
      %p106 = scmp.lt.s32.totalorder %s8, 5
      %p107 = pnand %p105, %p106
      %p108 = pneg %p107
      // Predicated region
      $region9: #{decoding_block_forward.3} parent=5 // pred_check
        _
      $region10: #{decoding_block_forward.3} parent=5 // pred_check_branch
        %110 = sbr.rel (%p107) target = $region12
      $region11: #{decoding_block_forward.3} parent=5 // pred_region
        %s111 = ssub.s32 %s8, 1
        // Predicated region
        $region13: #{decoding_block_forward.3} parent=11 // pred_check
          %p112 = pneg %p69
        $region14: #{decoding_block_forward.3} parent=11 // pred_check_branch
          %114 = sbr.rel (%p112) target = $region16
        $region15: #{decoding_block_forward.3} parent=11 // pred_region
          _
        $region16: #{decoding_block_forward.3} parent=11 // pred_fallthru
          _
      $region12: #{decoding_block_forward.3} parent=5 // pred_fallthru
        _
      %p115 = scmp.lt.s32.totalorder %s8, 4
      // Predicated region
      $region17: #{decoding_block_forward.3} parent=5 // pred_check
        %p116 = pneg %p115
      $region18: #{decoding_block_forward.3} parent=5 // pred_check_branch
        %118 = sbr.rel (%p116) target = $region20
      $region19: #{decoding_block_forward.3} parent=5 // pred_region
        // Predicated region
        $region21: #{decoding_block_forward.3} parent=19 // pred_check
          %p119 = pneg %p42
        $region22: #{decoding_block_forward.3} parent=19 // pred_check_branch
          %121 = sbr.rel (%p119) target = $region24
        $region23: #{decoding_block_forward.3} parent=19 // pred_region
          %s122 = sand.u32 %s32, 1
          %s123 = sand.u32 %s32, 1
          %s124 = smul.addr %s123, 288
          %s125 = scalar_lea.vmem [#allocation2], %s124
          %s126 = smul.u32 4, %s16
          %s127 = smul.addr %s15, 72
          %s128 = sadd.s32 %s126, %s127
          %s129 = smul.addr %s128, 8
          %s130 = scalar_lea.vmem %s0, %s129
          // Predicated region
          $region25: #{decoding_block_forward.3} parent=23 // pred_check
            _
          $region26: #{decoding_block_forward.3} parent=23 // pred_check_branch
            %132 = sbr.rel (0) target = $region28
          $region27: #{decoding_block_forward.3} parent=23 // pred_region
            // Predicated region
            $region29: #{decoding_block_forward.3} parent=27 // pred_check
              _
            $region30: #{decoding_block_forward.3} parent=27 // pred_check_branch
              %134 = sbr.rel (0) target = $region32
            $region31: #{decoding_block_forward.3} parent=27 // pred_region
              loop: start=0, step=1, limit=1
              $region33: #{decoding_block_forward.3} parent=31 // loop_pre_header
                _
              $region34: #{decoding_block_forward.3} parent=31 // loop_header
                %s136 = sphi 0, %s140
                %p137 = scmp.ge.s32.totalorder %s136, 1
                %s141 = sphi %s130, %s130
                %s142 = sphi %s125, %s125
              $region35: #{decoding_block_forward.3} parent=31 // loop_header_branch
                %139 = sbr.rel (%p137) target = $region39
              $region36: #{decoding_block_forward.3} parent=31 // loop_body
                %v143 = vld [vmem:[%s141] sm:$0xff]
                %144 = vst [vmem:[%s142] sm:$0xff] %v143
                %v145 = vld [vmem:[%s141 + $0x8] sm:$0xff]
                %146 = vst [vmem:[%s142 + $0x8] sm:$0xff] %v145
                %v147 = vld [vmem:[%s141 + $0x10] sm:$0xff]
                %148 = vst [vmem:[%s142 + $0x10] sm:$0xff] %v147
                %v149 = vld [vmem:[%s141 + $0x18] sm:$0xff]
                %150 = vst [vmem:[%s142 + $0x18] sm:$0xff] %v149
                %v151 = vld [vmem:[%s141 + $0x40] sm:$0xff]
                %152 = vst [vmem:[%s142 + $0x20] sm:$0xff] %v151
                %v153 = vld [vmem:[%s141 + $0x48] sm:$0xff]
                %154 = vst [vmem:[%s142 + $0x28] sm:$0xff] %v153
                %v155 = vld [vmem:[%s141 + $0x50] sm:$0xff]
                %156 = vst [vmem:[%s142 + $0x30] sm:$0xff] %v155
                %v157 = vld [vmem:[%s141 + $0x58] sm:$0xff]
                %158 = vst [vmem:[%s142 + $0x38] sm:$0xff] %v157
                %v159 = vld [vmem:[%s141 + $0x80] sm:$0xff]
                %160 = vst [vmem:[%s142 + $0x40] sm:$0xff] %v159
                %v161 = vld [vmem:[%s141 + $0x88] sm:$0xff]
                %162 = vst [vmem:[%s142 + $0x48] sm:$0xff] %v161
                %v163 = vld [vmem:[%s141 + $0x90] sm:$0xff]
                %164 = vst [vmem:[%s142 + $0x50] sm:$0xff] %v163
                %v165 = vld [vmem:[%s141 + $0x98] sm:$0xff]
                %166 = vst [vmem:[%s142 + $0x58] sm:$0xff] %v165
                %v167 = vld [vmem:[%s141 + $0xc0] sm:$0xff]
                %168 = vst [vmem:[%s142 + $0x60] sm:$0xff] %v167
                %v169 = vld [vmem:[%s141 + $0xc8] sm:$0xff]
                %170 = vst [vmem:[%s142 + $0x68] sm:$0xff] %v169
                %v171 = vld [vmem:[%s141 + $0xd0] sm:$0xff]
                %172 = vst [vmem:[%s142 + $0x70] sm:$0xff] %v171
                %v173 = vld [vmem:[%s141 + $0xd8] sm:$0xff]
                %174 = vst [vmem:[%s142 + $0x78] sm:$0xff] %v173
                %v175 = vld [vmem:[%s141 + $0x100] sm:$0xff]
                %176 = vst [vmem:[%s142 + $0x80] sm:$0xff] %v175
                %v177 = vld [vmem:[%s141 + $0x108] sm:$0xff]
                %178 = vst [vmem:[%s142 + $0x88] sm:$0xff] %v177
                %v179 = vld [vmem:[%s141 + $0x110] sm:$0xff]
                %180 = vst [vmem:[%s142 + $0x90] sm:$0xff] %v179
                %v181 = vld [vmem:[%s141 + $0x118] sm:$0xff]
                %182 = vst [vmem:[%s142 + $0x98] sm:$0xff] %v181
                %v183 = vld [vmem:[%s141 + $0x140] sm:$0xff]
                %184 = vst [vmem:[%s142 + $0xa0] sm:$0xff] %v183
                %v185 = vld [vmem:[%s141 + $0x148] sm:$0xff]
                %186 = vst [vmem:[%s142 + $0xa8] sm:$0xff] %v185
                %v187 = vld [vmem:[%s141 + $0x150] sm:$0xff]
                %188 = vst [vmem:[%s142 + $0xb0] sm:$0xff] %v187
                %v189 = vld [vmem:[%s141 + $0x158] sm:$0xff]
                %190 = vst [vmem:[%s142 + $0xb8] sm:$0xff] %v189
                %v191 = vld [vmem:[%s141 + $0x180] sm:$0xff]
                %192 = vst [vmem:[%s142 + $0xc0] sm:$0xff] %v191
                %v193 = vld [vmem:[%s141 + $0x188] sm:$0xff]
                %194 = vst [vmem:[%s142 + $0xc8] sm:$0xff] %v193
                %v195 = vld [vmem:[%s141 + $0x190] sm:$0xff]
                %196 = vst [vmem:[%s142 + $0xd0] sm:$0xff] %v195
                %v197 = vld [vmem:[%s141 + $0x198] sm:$0xff]
                %198 = vst [vmem:[%s142 + $0xd8] sm:$0xff] %v197
                %v199 = vld [vmem:[%s141 + $0x1c0] sm:$0xff]
                %200 = vst [vmem:[%s142 + $0xe0] sm:$0xff] %v199
                %v201 = vld [vmem:[%s141 + $0x1c8] sm:$0xff]
                %202 = vst [vmem:[%s142 + $0xe8] sm:$0xff] %v201
                %v203 = vld [vmem:[%s141 + $0x1d0] sm:$0xff]
                %204 = vst [vmem:[%s142 + $0xf0] sm:$0xff] %v203
                %v205 = vld [vmem:[%s141 + $0x1d8] sm:$0xff]
                %206 = vst [vmem:[%s142 + $0xf8] sm:$0xff] %v205
                %v207 = vld [vmem:[%s141 + $0x200] sm:$0xff]
                %208 = vst [vmem:[%s142 + $0x100] sm:$0xff] %v207
                %v209 = vld [vmem:[%s141 + $0x208] sm:$0xff]
                %210 = vst [vmem:[%s142 + $0x108] sm:$0xff] %v209
                %v211 = vld [vmem:[%s141 + $0x210] sm:$0xff]
                %212 = vst [vmem:[%s142 + $0x110] sm:$0xff] %v211
                %v213 = vld [vmem:[%s141 + $0x218] sm:$0xff]
                %214 = vst [vmem:[%s142 + $0x118] sm:$0xff] %v213
              $region37: #{decoding_block_forward.3} parent=31 // loop_footer
                %s140 = sadd.s32 1, %s136
              $region38: #{decoding_block_forward.3} parent=31 // loop_footer_branch
                %135 = sbr.rel target = $region34
              $region39: #{decoding_block_forward.3} parent=31 // loop_exit
                _
            $region32: #{decoding_block_forward.3} parent=27 // pred_fallthru
              _
            // Predicated region
            $region40: #{decoding_block_forward.3} parent=27 // pred_check
              _
            $region41: #{decoding_block_forward.3} parent=27 // pred_check_branch
              %216 = sbr.rel target = $region43
            $region42: #{decoding_block_forward.3} parent=27 // pred_region
              _
            $region43: #{decoding_block_forward.3} parent=27 // pred_fallthru
              _
          $region28: #{decoding_block_forward.3} parent=23 // pred_fallthru
            _
          %217 = vnop
        $region24: #{decoding_block_forward.3} parent=19 // pred_fallthru
          _
      $region20: #{decoding_block_forward.3} parent=5 // pred_fallthru
        _
      %p218 = scmp.le.s32.totalorder 1, %s8
      %p219 = scmp.lt.s32.totalorder %s8, 5
      %p220 = pnand %p218, %p219
      %p221 = pneg %p220
      // Predicated region
      $region44: #{decoding_block_forward.3} parent=5 // pred_check
        _
      $region45: #{decoding_block_forward.3} parent=5 // pred_check_branch
        %223 = sbr.rel (%p220) target = $region47
      $region46: #{decoding_block_forward.3} parent=5 // pred_region
        %s224 = ssub.s32 %s8, 1
        %s225 = sand.u32 %s35, 1
        %s226 = sand.u32 %s35, 1
        %s227 = smul.addr %s226, 288
        %s228 = scalar_lea.vmem [#allocation2], %s227
        // Predicated region
        $region48: #{decoding_block_forward.3} parent=46 // pred_check
          %p229 = pneg %p48
        $region49: #{decoding_block_forward.3} parent=46 // pred_check_branch
          %231 = sbr.rel (%p229) target = $region51
        $region50: #{decoding_block_forward.3} parent=46 // pred_region
          _
        $region51: #{decoding_block_forward.3} parent=46 // pred_fallthru
          _
        %s232 = sand.u32 %s35, 1
        %s233 = sand.u32 %s35, 1
        %s234 = smul.addr %s233, 288
        %s235 = scalar_lea.vmem [#allocation2], %s234
        %p236 = pneg %p48
        %p237 = pneg %p45
        %p238 = pneg %p69
        %p239 = pneg %p66
        %p240 = pneg %p97
        %p241 = pneg %p94
        %s242 = smul.u32 4, %s18
        %p243 = scmp.lt.s32.totalorder %s17, 1
        %s244 = scalar_select %p243, %s17, 1
        %p245 = scmp.lt.s32.totalorder %s242, 7
        %s246 = scalar_select %p245, %s242, 7
        %s247 = smul.addr %s244, 8
        %s248 = sadd.s32 %s246, %s247
        %s249 = smul.addr %s248, 8
        %s250 = scalar_lea.vmem %s2, %s249
        %s251 = smul.u32 4, %s18
        %s252 = smul.u32 4, %s18
        %p253 = scmp.lt.s32.totalorder %s17, 1
        %s254 = scalar_select %p253, %s17, 1
        %p255 = scmp.lt.s32.totalorder %s252, 7
        %s256 = scalar_select %p255, %s252, 7
        %s257 = smul.addr %s254, 8
        %s258 = sadd.s32 %s256, %s257
        %s259 = smul.addr %s258, 8
        %s260 = scalar_lea.vmem %s2, %s259
        %s261 = smul.u32 4, %s18
        %v262 = vld [vmem:[%s1] sm:$0xff]
        %v263 = vld [vmem:[%s228] sm:$0xff]
        %v264 = vld [vmem:[%s228 + $0x8] sm:$0xff]
        %v265 = vld [vmem:[%s228 + $0x10] sm:$0xff]
        %v266 = vld [vmem:[%s228 + $0x18] sm:$0xff]
        %v267 = vld [vmem:[%s228 + $0x20] sm:$0xff]
        %v268 = vld [vmem:[%s228 + $0x28] sm:$0xff]
        %v269 = vld [vmem:[%s228 + $0x30] sm:$0xff]
        %v270 = vld [vmem:[%s228 + $0x38] sm:$0xff]
        %v271 = vld [vmem:[%s228 + $0x40] sm:$0xff]
        %v272 = vld [vmem:[%s228 + $0x48] sm:$0xff]
        %v273 = vld [vmem:[%s228 + $0x50] sm:$0xff]
        %v274 = vld [vmem:[%s228 + $0x58] sm:$0xff]
        %v275 = vld [vmem:[%s228 + $0x60] sm:$0xff]
        %v276 = vld [vmem:[%s228 + $0x68] sm:$0xff]
        %v277 = vld [vmem:[%s228 + $0x70] sm:$0xff]
        %v278 = vld [vmem:[%s228 + $0x78] sm:$0xff]
        %v279 = vld [vmem:[%s228 + $0x80] sm:$0xff]
        %v280 = vld [vmem:[%s228 + $0x88] sm:$0xff]
        %v281 = vld [vmem:[%s228 + $0x90] sm:$0xff]
        %v282 = vld [vmem:[%s228 + $0x98] sm:$0xff]
        %v283 = vld [vmem:[%s228 + $0xa0] sm:$0xff]
        %v284 = vld [vmem:[%s228 + $0xa8] sm:$0xff]
        %v285 = vld [vmem:[%s228 + $0xb0] sm:$0xff]
        %v286 = vld [vmem:[%s228 + $0xb8] sm:$0xff]
        %v287 = vld [vmem:[%s228 + $0xc0] sm:$0xff]
        %v288 = vld [vmem:[%s228 + $0xc8] sm:$0xff]
        %v289 = vld [vmem:[%s228 + $0xd0] sm:$0xff]
        %v290 = vld [vmem:[%s228 + $0xd8] sm:$0xff]
        %v291 = vld [vmem:[%s228 + $0xe0] sm:$0xff]
        %v292 = vld [vmem:[%s228 + $0xe8] sm:$0xff]
        %v293 = vld [vmem:[%s228 + $0xf0] sm:$0xff]
        %v294 = vld [vmem:[%s228 + $0xf8] sm:$0xff]
        %v295 = vld [vmem:[%s228 + $0x100] sm:$0xff]
        %v296 = vld [vmem:[%s228 + $0x108] sm:$0xff]
        %v297 = vld [vmem:[%s228 + $0x110] sm:$0xff]
        %v298 = vld [vmem:[%s228 + $0x118] sm:$0xff]
        %vm299 = vcmask 588800
        %v301 = vsel %vm299, %v262, 0
        %303 = vmatpush.msra.mxu0 0.0
        %304 = vmatpush.msra.mxu0 0.0
        %305 = vmatpush.msra.mxu0 0.0
        %306 = vmatpush.msra.mxu0 0.0
        %307 = vmatpush.msra.mxu0 0.0
        %308 = vmatpush.msra.mxu0 0.0
        %309 = vmatpush.msra.mxu0 0.0
        %310 = vmatpush.msra.mxu0 %v295
        %311 = vmatpush.msra.mxu0 %v291
        %312 = vmatpush.msra.mxu0 %v287
        %313 = vmatpush.msra.mxu0 %v283
        %314 = vmatpush.msra.mxu0 %v279
        %315 = vmatpush.msra.mxu0 %v275
        %316 = vmatpush.msra.mxu0 %v271
        %317 = vmatpush.msra.mxu0 %v267
        %318 = vmatpush.msra.mxu0 %v263
        %319 = vmatmul.f32.gmra.mxu0 %v301
        %v320 = vpop.f32.mrf.mxu0
        %v321 = vadd.f32 0.0, %v320
        %322 = vdwg.mxu0
        %323 = vmatpush.msra.mxu0 0.0
        %324 = vmatpush.msra.mxu0 0.0
        %325 = vmatpush.msra.mxu0 0.0
        %326 = vmatpush.msra.mxu0 0.0
        %327 = vmatpush.msra.mxu0 0.0
        %328 = vmatpush.msra.mxu0 0.0
        %329 = vmatpush.msra.mxu0 0.0
        %330 = vmatpush.msra.mxu0 %v296
        %331 = vmatpush.msra.mxu0 %v292
        %332 = vmatpush.msra.mxu0 %v288
        %333 = vmatpush.msra.mxu0 %v284
        %334 = vmatpush.msra.mxu0 %v280
        %335 = vmatpush.msra.mxu0 %v276
        %336 = vmatpush.msra.mxu0 %v272
        %337 = vmatpush.msra.mxu0 %v268
        %338 = vmatpush.msra.mxu0 %v264
        %339 = vmatmul.f32.gmra.mxu0 %v301
        %v340 = vpop.f32.mrf.mxu0
        %v341 = vadd.f32 0.0, %v340
        %342 = vdwg.mxu0
        %343 = vmatpush.msra.mxu0 0.0
        %344 = vmatpush.msra.mxu0 0.0
        %345 = vmatpush.msra.mxu0 0.0
        %346 = vmatpush.msra.mxu0 0.0
        %347 = vmatpush.msra.mxu0 0.0
        %348 = vmatpush.msra.mxu0 0.0
        %349 = vmatpush.msra.mxu0 0.0
        %350 = vmatpush.msra.mxu0 %v297
        %351 = vmatpush.msra.mxu0 %v293
        %352 = vmatpush.msra.mxu0 %v289
        %353 = vmatpush.msra.mxu0 %v285
        %354 = vmatpush.msra.mxu0 %v281
        %355 = vmatpush.msra.mxu0 %v277
        %356 = vmatpush.msra.mxu0 %v273
        %357 = vmatpush.msra.mxu0 %v269
        %358 = vmatpush.msra.mxu0 %v265
        %359 = vmatmul.f32.gmra.mxu0 %v301
        %v360 = vpop.f32.mrf.mxu0
        %v361 = vadd.f32 0.0, %v360
        %362 = vdwg.mxu0
        %363 = vmatpush.msra.mxu0 0.0
        %364 = vmatpush.msra.mxu0 0.0
        %365 = vmatpush.msra.mxu0 0.0
        %366 = vmatpush.msra.mxu0 0.0
        %367 = vmatpush.msra.mxu0 0.0
        %368 = vmatpush.msra.mxu0 0.0
        %369 = vmatpush.msra.mxu0 0.0
        %370 = vmatpush.msra.mxu0 %v298
        %371 = vmatpush.msra.mxu0 %v294
        %372 = vmatpush.msra.mxu0 %v290
        %373 = vmatpush.msra.mxu0 %v286
        %374 = vmatpush.msra.mxu0 %v282
        %375 = vmatpush.msra.mxu0 %v278
        %376 = vmatpush.msra.mxu0 %v274
        %377 = vmatpush.msra.mxu0 %v270
        %378 = vmatpush.msra.mxu0 %v266
        %379 = vmatmul.f32.gmra.mxu0 %v301
        %v380 = vpop.f32.mrf.mxu0
        %v381 = vadd.f32 0.0, %v380
        %382 = vdwg.mxu0
        %383 = vst [vmem:[%s260] sm:$0xff] %v321
        %384 = vst [vmem:[%s260 + $0x8] sm:$0xff] %v341
        %385 = vst [vmem:[%s260 + $0x10] sm:$0xff] %v361
        %386 = vst [vmem:[%s260 + $0x18] sm:$0xff] %v381
        %s387 = smul.u32 4, %s18
        %p388 = scmp.lt.s32.totalorder %s17, 1
        %s389 = scalar_select %p388, %s17, 1
        %p390 = scmp.lt.s32.totalorder %s387, 7
        %s391 = scalar_select %p390, %s387, 7
        %s392 = smul.addr %s389, 8
        %s393 = sadd.s32 %s391, %s392
        %s394 = smul.addr %s393, 8
        %s395 = scalar_lea.vmem %s2, %s394
        // Predicated region
        $region52: #{decoding_block_forward.3} parent=46 // pred_check
          %p396 = pneg %p94
        $region53: #{decoding_block_forward.3} parent=46 // pred_check_branch
          %398 = sbr.rel (%p396) target = $region55
        $region54: #{decoding_block_forward.3} parent=46 // pred_region
          %s399 = smul.u32 4, %s18
        $region55: #{decoding_block_forward.3} parent=46 // pred_fallthru
          _
      $region47: #{decoding_block_forward.3} parent=5 // pred_fallthru
        _
      %p400 = scmp.le.s32.totalorder 2, %s8
      // Predicated region
      $region56: #{decoding_block_forward.3} parent=5 // pred_check
        %p401 = pneg %p400
      $region57: #{decoding_block_forward.3} parent=5 // pred_check_branch
        %403 = sbr.rel (%p401) target = $region59
      $region58: #{decoding_block_forward.3} parent=5 // pred_region
        %s404 = ssub.s32 %s8, 2
        // Predicated region
        $region60: #{decoding_block_forward.3} parent=58 // pred_check
          %p405 = pneg %p100
        $region61: #{decoding_block_forward.3} parent=58 // pred_check_branch
          %407 = sbr.rel (%p405) target = $region63
        $region62: #{decoding_block_forward.3} parent=58 // pred_region
          %s408 = smul.u32 4, %s20
          %p409 = scmp.lt.s32.totalorder %s19, 1
          %s410 = scalar_select %p409, %s19, 1
          %p411 = scmp.lt.s32.totalorder %s408, 7
          %s412 = scalar_select %p411, %s408, 7
          %s413 = smul.addr %s410, 8
          %s414 = sadd.s32 %s412, %s413
          %s415 = smul.addr %s414, 8
          %s416 = scalar_lea.vmem %s2, %s415
        $region63: #{decoding_block_forward.3} parent=58 // pred_fallthru
          _
      $region59: #{decoding_block_forward.3} parent=5 // pred_fallthru
        _
    $region6: #{decoding_block_forward.3} parent=1 // loop_footer
      %s12 = sadd.s32 1, %s8
    $region7: #{decoding_block_forward.3} parent=1 // loop_footer_branch
      %7 = sbr.rel target = $region3
    $region8: #{decoding_block_forward.3} parent=1 // loop_exit
      _

</llo_original>
